<compile_context>
chip_gen: v7x
topology: tpu7x:2x2x1
jax: 0.10.0
libtpu: 0.0.40
codegen_flags: <defaults>
</compile_context>

<pallas_src>
import jax
import jax.numpy as jnp
from jax.experimental import pallas as pl
from jax.experimental.pallas import tpu as pltpu


def _round_up(n, m):
    return ((n + m - 1) // m) * m


def _mlp_kernel(x_ref, w1_ref, b1_ref, w2_ref, b2_ref, o_ref):
    # Hot path: two MXU matmuls (bf16 inputs, f32 accumulation) + VPU relu,
    # fused in a single kernel invocation.
    x = x_ref[...].astype(w1_ref.dtype)
    h = jnp.dot(x, w1_ref[...], preferred_element_type=jnp.float32) + b1_ref[...]
    h = jnp.maximum(h, 0.0)                                   # ReLU (f32 VPU)
    y = jnp.dot(h.astype(w2_ref.dtype), w2_ref[...],
                preferred_element_type=jnp.float32) + b2_ref[...]
    o_ref[...] = y.astype(o_ref.dtype)


def init_params(key, input_size, hidden_size, output_size):
    """Deterministic f32 init mimicking nn.Linear's uniform(-1/sqrt(fan_in), ...)."""
    k1, k2, k3, k4 = jax.random.split(key, 4)
    bound1 = 1.0 / jnp.sqrt(input_size)
    bound2 = 1.0 / jnp.sqrt(hidden_size)
    # Stored pre-transposed: (in, out)
    w1 = jax.random.uniform(k1, (input_size, hidden_size), jnp.float32,
                            -bound1, bound1)
    b1 = jax.random.uniform(k2, (1, hidden_size), jnp.float32, -bound1, bound1)
    w2 = jax.random.uniform(k3, (hidden_size, output_size), jnp.float32,
                            -bound2, bound2)
    b2 = jax.random.uniform(k4, (1, output_size), jnp.float32, -bound2, bound2)
    return w1, b1, w2, b2


def to_device_params(w1, b1, w2, b2):
    """Cast weights to bf16 for the kernel (halves weight DMA, bf16 MXU path).

    Biases stay f32: bias add + ReLU happen on the f32 MXU accumulator, so
    v5e's lack of bf16 VPU does not matter.
    """
    return (w1.astype(jnp.bfloat16), b1.astype(jnp.float32),
            w2.astype(jnp.bfloat16), b2.astype(jnp.float32))


def neural_net_forward(x, w1, b1, w2, b2, *, block_b=4096, gridless_max_b=1024):
    """Forward pass of NeuralNet: linear2(relu(linear1(x))).

    x  : (B, input_size)        float32
    w1 : (input_size, hidden)   bf16 (or f32)   (transposed vs. PyTorch storage)
    b1 : (1, hidden)            float32
    w2 : (hidden, output_size)  bf16 (or f32)
    b2 : (1, output_size)       float32
    returns (B, output_size) float32

    block_b        : row-tile size for the gridded large-batch path.
    gridless_max_b : batches <= this take the single-invocation grid-less path
                     (lower it on v7x so mid-size batches get >=2 parallel
                     grid blocks for the 2 TensorCores).
    """
    B, in_size = x.shape
    hidden = w1.shape[1]
    output_size = w2.shape[1]          # true width: params are never padded.

    flops = 2 * B * (in_size * hidden + hidden * output_size)
    bytes_accessed = (x.size * x.dtype.itemsize
                      + w1.size * w1.dtype.itemsize
                      + b1.size * b1.dtype.itemsize
                      + w2.size * w2.dtype.itemsize
                      + b2.size * b2.dtype.itemsize
                      + B * output_size * 4)
    cost = pl.CostEstimate(flops=flops, transcendentals=0,
                           bytes_accessed=bytes_accessed)
    out_shape = jax.ShapeDtypeStruct((B, output_size), jnp.float32)

    if B <= gridless_max_b:
        # Small batch: everything fits trivially in VMEM -> single fused
        # invocation with full-extent VMEM blocks, no grid machinery at all.
        return pl.pallas_call(
            _mlp_kernel,
            out_shape=out_shape,
            in_specs=[pl.BlockSpec(memory_space=pltpu.MemorySpace.VMEM)] * 5,
            out_specs=pl.BlockSpec(memory_space=pltpu.MemorySpace.VMEM),
            cost_estimate=cost,
        )(x, w1, b1, w2, b2)

    # Large batch: tile rows over a parallel grid.  Weights use constant
    # full-extent blocks (index_map -> (0,0)) so they stay VMEM-resident while
    # x/out row tiles double-buffer against the matmuls.  Guarantee >=2 grid
    # blocks so v7x can shard the parallel axis across both TensorCores.
    if pl.cdiv(B, block_b) < 2:
        block_b = max(8, _round_up(-(-B // 2), 8))
    block_b = min(block_b, _round_up(B, 8))

    return pl.pallas_call(
        _mlp_kernel,
        out_shape=out_shape,
        grid=(pl.cdiv(B, block_b),),
        in_specs=[
            pl.BlockSpec((block_b, in_size), lambda i: (i, 0)),
            pl.BlockSpec((in_size, hidden), lambda i: (0, 0)),
            pl.BlockSpec((1, hidden), lambda i: (0, 0)),
            pl.BlockSpec((hidden, output_size), lambda i: (0, 0)),
            pl.BlockSpec((1, output_size), lambda i: (0, 0)),
        ],
        out_specs=pl.BlockSpec((block_b, output_size), lambda i: (i, 0)),
        compiler_params=pltpu.CompilerParams(
            dimension_semantics=("parallel",)),
        cost_estimate=cost,
    )(x, w1, b1, w2, b2)


if __name__ == "__main__":
    # Small shapes consistent with a Q-learning state->Q-value MLP.
    batch, input_size, hidden_size, output_size = 8, 16, 32, 6

    key = jax.random.PRNGKey(0)
    kx, kp, kx2 = jax.random.split(key, 3)
    x = jax.random.normal(kx, (batch, input_size), dtype=jnp.float32)
    w1, b1, w2, b2 = init_params(kp, input_size, hidden_size, output_size)
    dw1, db1, dw2, db2 = to_device_params(w1, b1, w2, b2)   # bf16 weights

    # f32 reference (PyTorch semantics); bf16 weights => looser tolerance.
    ref = jnp.maximum(x @ w1 + b1, 0.0) @ w2 + b2

    # Grid-less small-batch path.
    out = neural_net_forward(x, dw1, db1, dw2, db2)
    out = jax.block_until_ready(out)
    assert out.shape == (batch, output_size)
    assert jnp.allclose(out, ref, atol=3e-2, rtol=3e-2)

    # Batch-tiled ("parallel" grid, VMEM-resident weights) path; lowered
    # grid-less threshold forces the grid path and produces 2 blocks.
    big_b = 1024
    xb = jax.random.normal(kx2, (big_b, input_size), dtype=jnp.float32)
    refb = jnp.maximum(xb @ w1 + b1, 0.0) @ w2 + b2
    outb = neural_net_forward(xb, dw1, db1, dw2, db2, gridless_max_b=256)
    outb = jax.block_until_ready(outb)
    assert outb.shape == (big_b, output_size)
    assert jnp.allclose(outb, refb, atol=3e-2, rtol=3e-2)

    print("KERNEL_OK")
</pallas_src>

<mosaic_0001>
module attributes {stable_mosaic.version = 11 : i64} {
  func.func @_mlp_kernel(%arg0: memref<8x16xf32, #tpu.memory_space<vmem>>, %arg1: memref<16x32xbf16, #tpu.memory_space<vmem>>, %arg2: memref<1x32xf32, #tpu.memory_space<vmem>>, %arg3: memref<32x6xbf16, #tpu.memory_space<vmem>>, %arg4: memref<1x6xf32, #tpu.memory_space<vmem>>, %arg5: memref<8x6xf32, #tpu.memory_space<vmem>>) attributes {dimension_semantics = [], scalar_prefetch = 0 : i64, scratch_operands = 0 : i64, tpu.core_type = #tpu.core_type<tc>} {
    %c0 = arith.constant 0 : index
    %c0_0 = arith.constant 0 : index
    %0 = vector.load %arg0[%c0, %c0_0] : memref<8x16xf32, #tpu.memory_space<vmem>>, vector<8x16xf32>
    %1 = arith.truncf %0 : vector<8x16xf32> to vector<8x16xbf16>
    %c0_1 = arith.constant 0 : index
    %c0_2 = arith.constant 0 : index
    %2 = vector.load %arg1[%c0_1, %c0_2] : memref<16x32xbf16, #tpu.memory_space<vmem>>, vector<16x32xbf16>
    %cst = arith.constant dense<0.000000e+00> : vector<8x32xf32>
    %3 = tpu.matmul %1, %2, %cst {dimension_numbers = #tpu.dot_dimension_numbers<[1], [0], [0], [1], [0, 0, 1, 1], [], []>} : vector<8x16xbf16>, vector<16x32xbf16>, vector<8x32xf32> -> vector<8x32xf32>
    %c0_3 = arith.constant 0 : index
    %c0_4 = arith.constant 0 : index
    %4 = vector.load %arg2[%c0_3, %c0_4] : memref<1x32xf32, #tpu.memory_space<vmem>>, vector<1x32xf32>
    %5 = vector.broadcast %4 : vector<1x32xf32> to vector<8x32xf32>
    %6 = arith.addf %3, %5 : vector<8x32xf32>
    %cst_5 = arith.constant 0.000000e+00 : f32
    %7 = vector.broadcast %cst_5 : f32 to vector<8x32xf32>
    %8 = arith.maximumf %6, %7 : vector<8x32xf32>
    %9 = arith.truncf %8 : vector<8x32xf32> to vector<8x32xbf16>
    %c0_6 = arith.constant 0 : index
    %c0_7 = arith.constant 0 : index
    %10 = vector.load %arg3[%c0_6, %c0_7] : memref<32x6xbf16, #tpu.memory_space<vmem>>, vector<32x6xbf16>
    %cst_8 = arith.constant dense<0.000000e+00> : vector<8x6xf32>
    %11 = tpu.matmul %9, %10, %cst_8 {dimension_numbers = #tpu.dot_dimension_numbers<[1], [0], [0], [1], [0, 0, 1, 1], [], []>} : vector<8x32xbf16>, vector<32x6xbf16>, vector<8x6xf32> -> vector<8x6xf32>
    %c0_9 = arith.constant 0 : index
    %c0_10 = arith.constant 0 : index
    %12 = vector.load %arg4[%c0_9, %c0_10] : memref<1x6xf32, #tpu.memory_space<vmem>>, vector<1x6xf32>
    %13 = vector.broadcast %12 : vector<1x6xf32> to vector<8x6xf32>
    %14 = arith.addf %11, %13 : vector<8x6xf32>
    %c0_11 = arith.constant 0 : index
    %c0_12 = arith.constant 0 : index
    %15 = vector.load %arg5[%c0_11, %c0_12] : memref<8x6xf32, #tpu.memory_space<vmem>>, vector<8x6xf32>
    tpu.vector_store %arg5[%c0_11, %c0_12], %14 {strides = array<i32>} : memref<8x6xf32, #tpu.memory_space<vmem>>, vector<8x6xf32>,
    return
  }
}

</mosaic_0001>

<llo_original>
// kernel: tpu_custom_call.1
$region0: #{tpu_custom_call.1}
  #allocation0 [shape = 'u32[]', space=smem, size = 0x4, offset = 0x4, fixed_abs, tag = 'smem constant byte address 0x4 - core index']
  #allocation1 [shape = 'u32[144,128]{1,0:T(1,128)}', space=vmem, size = 0x12000, scoped, tag = 'internal scratch']
  %s0 = inlined_call_operand.vmem [shape: f32[8,16], index: 0, kind: input, shape index: {}]
  %s1 = inlined_call_operand.vmem [shape: bf16[16,32], index: 1, kind: input, shape index: {}]
  %s2 = inlined_call_operand.vmem [shape: f32[1,32], index: 2, kind: input, shape index: {}]
  %s3 = inlined_call_operand.vmem [shape: bf16[32,6], index: 3, kind: input, shape index: {}]
  %s4 = inlined_call_operand.vmem [shape: f32[1,6], index: 4, kind: input, shape index: {}]
  %s5 = inlined_call_operand.hbm [shape: f32[8,6], index: 5, kind: output, shape index: {}]
  %s6 = sld [smem:[#allocation0]]
  $region30: #{tpu_custom_call.1} parent=0
    _
  %s8 = ssub.s32 1, %s6
  %s9 = scalar_select 0, %s8, %s6
  $region1: #{tpu_custom_call.1} parent=0
    #allocation2 [shape = 'u8[4096]{0}', space=vmem, size = 0x1000, scoped, tag = 'output window, operand 0, single buffered']
    #allocation3 [shape = 's32[1]{0}', space=sflag, size = 0x4, scoped, tag = 'scoped memory for tpu_custom_call.1']
    %10 = vsyncpa [#allocation3], 0
    // Predicated region
    $region2: #{tpu_custom_call.1} parent=1 // pred_check
      _
    $region3: #{tpu_custom_call.1} parent=1 // pred_check_branch
      %12 = sbr.rel (0) target = $region5
    $region4: #{tpu_custom_call.1} parent=1 // pred_region
      _
    $region5: #{tpu_custom_call.1} parent=1 // pred_fallthru
      _
    // Predicated region
    $region6: #{tpu_custom_call.1} parent=1 // pred_check
      _
    $region7: #{tpu_custom_call.1} parent=1 // pred_check_branch
      %14 = sbr.rel (0) target = $region9
    $region8: #{tpu_custom_call.1} parent=1 // pred_region
      _
    $region9: #{tpu_custom_call.1} parent=1 // pred_fallthru
      _
    // Predicated region
    $region10: #{tpu_custom_call.1} parent=1 // pred_check
      _
    $region11: #{tpu_custom_call.1} parent=1 // pred_check_branch
      %16 = sbr.rel (0) target = $region13
    $region12: #{tpu_custom_call.1} parent=1 // pred_region
      _
    $region13: #{tpu_custom_call.1} parent=1 // pred_fallthru
      _
    // Predicated region
    $region14: #{tpu_custom_call.1} parent=1 // pred_check
      _
    $region15: #{tpu_custom_call.1} parent=1 // pred_check_branch
      %18 = sbr.rel (0) target = $region17
    $region16: #{tpu_custom_call.1} parent=1 // pred_region
      _
    $region17: #{tpu_custom_call.1} parent=1 // pred_fallthru
      _
    // Predicated region
    $region18: #{tpu_custom_call.1} parent=1 // pred_check
      _
    $region19: #{tpu_custom_call.1} parent=1 // pred_check_branch
      %20 = sbr.rel (0) target = $region21
    $region20: #{tpu_custom_call.1} parent=1 // pred_region
      _
    $region21: #{tpu_custom_call.1} parent=1 // pred_fallthru
      _
    %v22 = vld [vmem:[%s0] sm:$0xff]
    %v23 = vpack.c.bf16 %v22, %v22
    %v24 = vld [vmem:[%s1] sm:$0xf]
    %v25 = vld [vmem:[%s1 + $0x4] sm:$0xf]
    %v26 = vld [vmem:[%s2] sm:$0x1]
    %v28 = vlaneseq
    %v29 = vshrl.u32 %v28, 7
    %v30 = vsub.s32 0, %v29
    %v31 = vrot.slane %v26, %v30
    %v35 = vunpack.c.l.b16 %v24
    %v36 = vunpack.c.l.b16 %v25
    %v37 = vpack.c.b16 %v36, %v35
    %vm39 = vcmask 130048
    %v41 = vsel %vm39, %v23, 0
    %43 = vmatprep.subr.bf16.mxu0 0
    %44 = vmatpush1.bf16.msra.mxu0 %v37
    %45 = vmatprep.subr.bf16.mxu0 0
    %46 = vmatpush1.bf16.msra.mxu0 0
    %47 = vmatprep.subr.bf16.mxu0 0
    %48 = vmatpush1.bf16.msra.mxu0 0
    %49 = vmatprep.subr.bf16.mxu0 0
    %50 = vmatpush1.bf16.msra.mxu0 0
    %51 = vmatprep.subr.bf16.mxu0 0
    %52 = vmatpush1.bf16.msra.mxu0 0
    %53 = vmatprep.subr.bf16.mxu0 0
    %54 = vmatpush1.bf16.msra.mxu0 0
    %55 = vmatprep.subr.bf16.mxu0 0
    %56 = vmatpush1.bf16.msra.mxu0 0
    %57 = vmatprep.subr.bf16.mxu0 0
    %58 = vmatpush1.bf16.msra.mxu0 0
    %59 = vmatprep.subr.bf16.mxu0 0
    %60 = vmatpush1.bf16.msra.mxu0 0
    %61 = vmatprep.subr.bf16.mxu0 0
    %62 = vmatpush1.bf16.msra.mxu0 0
    %63 = vmatprep.subr.bf16.mxu0 0
    %64 = vmatpush1.bf16.msra.mxu0 0
    %65 = vmatprep.subr.bf16.mxu0 0
    %66 = vmatpush1.bf16.msra.mxu0 0
    %67 = vmatprep.subr.bf16.mxu0 0
    %68 = vmatpush1.bf16.msra.mxu0 0
    %69 = vmatprep.subr.bf16.mxu0 0
    %70 = vmatpush1.bf16.msra.mxu0 0
    %71 = vmatprep.subr.bf16.mxu0 0
    %72 = vmatpush1.bf16.msra.mxu0 0
    %73 = vmatprep.subr.bf16.mxu0 0
    %74 = vmatpush1.bf16.msra.mxu0 0
    %75 = vmatprep.mubr.bf16.mxu0 0
    %76 = vmatmul.mubr.bf16.gmra.mrb[0].mxu0 %v41
    %v77 = vpop.f32.mrb[0].mxu0
    %v78 = vadd.f32 %v31, %v77
    %v79 = vpop.f32.mrb[0].mxu0
    %v80 = vpop.f32.mrb[0].mxu0
    %v81 = vpop.f32.mrb[0].mxu0
    %82 = vdwg.mxu0
    %v83 = vmax.f32 %v78, 0.0
    %v84 = vpack.c.bf16 %v83, %v83
    %v85 = vld [vmem:[%s3] sm:$0xf]
    %v86 = vld [vmem:[%s3 + $0x4] sm:$0xf]
    %v87 = vld [vmem:[%s3 + $0x8] sm:$0xf]
    %v88 = vld [vmem:[%s3 + $0xc] sm:$0xf]
    %v89 = vld [vmem:[%s4] sm:$0x1]
    %v91 = vlaneseq
    %v92 = vshrl.u32 %v91, 7
    %v93 = vsub.s32 0, %v92
    %v94 = vrot.slane %v89, %v93
    %v100 = vunpack.c.l.b16 %v85
    %v101 = vunpack.c.l.b16 %v86
    %v102 = vunpack.c.l.b16 %v87
    %v103 = vunpack.c.l.b16 %v88
    %v104 = vpack.c.b16 %v101, %v100
    %v105 = vpack.c.b16 %v103, %v102
    %vm108 = vcmask 261120
    %v110 = vsel %vm108, %v84, 0
    %112 = vmatprep.subr.bf16.mxu0 0
    %113 = vmatpush1.bf16.msra.mxu0 %v104
    %114 = vmatprep.subr.bf16.mxu0 0
    %115 = vmatpush1.bf16.msra.mxu0 %v105
    %116 = vmatprep.subr.bf16.mxu0 0
    %117 = vmatpush1.bf16.msra.mxu0 0
    %118 = vmatprep.subr.bf16.mxu0 0
    %119 = vmatpush1.bf16.msra.mxu0 0
    %120 = vmatprep.subr.bf16.mxu0 0
    %121 = vmatpush1.bf16.msra.mxu0 0
    %122 = vmatprep.subr.bf16.mxu0 0
    %123 = vmatpush1.bf16.msra.mxu0 0
    %124 = vmatprep.subr.bf16.mxu0 0
    %125 = vmatpush1.bf16.msra.mxu0 0
    %126 = vmatprep.subr.bf16.mxu0 0
    %127 = vmatpush1.bf16.msra.mxu0 0
    %128 = vmatprep.subr.bf16.mxu0 0
    %129 = vmatpush1.bf16.msra.mxu0 0
    %130 = vmatprep.subr.bf16.mxu0 0
    %131 = vmatpush1.bf16.msra.mxu0 0
    %132 = vmatprep.subr.bf16.mxu0 0
    %133 = vmatpush1.bf16.msra.mxu0 0
    %134 = vmatprep.subr.bf16.mxu0 0
    %135 = vmatpush1.bf16.msra.mxu0 0
    %136 = vmatprep.subr.bf16.mxu0 0
    %137 = vmatpush1.bf16.msra.mxu0 0
    %138 = vmatprep.subr.bf16.mxu0 0
    %139 = vmatpush1.bf16.msra.mxu0 0
    %140 = vmatprep.subr.bf16.mxu0 0
    %141 = vmatpush1.bf16.msra.mxu0 0
    %142 = vmatprep.subr.bf16.mxu0 0
    %143 = vmatpush1.bf16.msra.mxu0 0
    %144 = vmatprep.mubr.bf16.mxu0 0
    %145 = vmatmul.mubr.bf16.gmra.mrb[0].mxu0 %v110
    %v146 = vpop.f32.mrb[0].mxu0
    %v147 = vadd.f32 %v94, %v146
    %v148 = vpop.f32.mrb[0].mxu0
    %v149 = vpop.f32.mrb[0].mxu0
    %v150 = vpop.f32.mrb[0].mxu0
    %151 = vdwg.mxu0
    %vm152 = vcmask 48128
    %153 = vst.msk [vmem:[#allocation2] sm:$0xff] %vm152, %v147
    // Predicated region
    $region22: #{tpu_custom_call.1} parent=1 // pred_check
      _
    $region23: #{tpu_custom_call.1} parent=1 // pred_check_branch
      %155 = sbr.rel (0) target = $region25
    $region24: #{tpu_custom_call.1} parent=1 // pred_region
      %s157 = ssub.s32 128, 128
      %158 = vsyncadd [#allocation3], %s157
      %s160 = sshll.u32 [#allocation2], 4
      %s161 = int_to_ptr.vmem [resolvable:$true] %s160
      %163 = dma.vmem_to_hbm [thread:$0]  %s161, 128, %s5, [#allocation3]
    $region25: #{tpu_custom_call.1} parent=1 // pred_fallthru
      _
    // Predicated region
    $region26: #{tpu_custom_call.1} parent=1 // pred_check
      _
    $region27: #{tpu_custom_call.1} parent=1 // pred_check_branch
      %165 = sbr.rel (0) target = $region29
    $region28: #{tpu_custom_call.1} parent=1 // pred_region
      %166 = dma.done [#allocation3], 128
    $region29: #{tpu_custom_call.1} parent=1 // pred_fallthru
      _
    %167 = vsyncpa [#allocation3], 1

</llo_original>
